<compile_context>
chip_gen: v6e
topology: v6e:2x2x1
jax: 0.10.0
libtpu: 0.0.40
codegen_flags: <defaults>
</compile_context>

<pallas_src>
import jax
import jax.numpy as jnp
from jax.experimental import pallas as pl
from jax.experimental.pallas import tpu as pltpu

H1, H2, H3 = 256, 128, 64          # hidden sizes fixed by the PyTorch module
SMALL_BATCH_CAP = 1024             # up to this many rows: one tile, grid=(1,)
LARGE_TILE_B = 1024                # tile size for big replay-buffer batches


def _round_up(n, m):
    return (n + m - 1) // m * m


def dqn_mlp_kernel(x_ref,
                   w1_ref, b1_ref,
                   w2_ref, b2_ref,
                   w3_ref, b3_ref,
                   w4_ref, b4_ref,
                   o_ref):
    # Whole 4-layer MLP on one (tile_b, in_features) batch tile.
    # Matmul operands bf16 (MXU native); bias/ReLU/accumulation in f32
    # (v5e VPU has no bf16 VALU, and f32 accumulation preserves accuracy).
    h = x_ref[...].astype(jnp.bfloat16)          # in-kernel cast: no wrapper bf16 copy
    h = jnp.dot(h, w1_ref[...], preferred_element_type=jnp.float32) + b1_ref[...]
    h = jnp.maximum(h, 0.0).astype(jnp.bfloat16)
    h = jnp.dot(h, w2_ref[...], preferred_element_type=jnp.float32) + b2_ref[...]
    h = jnp.maximum(h, 0.0).astype(jnp.bfloat16)
    h = jnp.dot(h, w3_ref[...], preferred_element_type=jnp.float32) + b3_ref[...]
    h = jnp.maximum(h, 0.0).astype(jnp.bfloat16)
    h = jnp.dot(h, w4_ref[...], preferred_element_type=jnp.float32) + b4_ref[...]
    o_ref[...] = h.astype(o_ref.dtype)           # (tile_b, out_features) f32 store


def init_dqn_params(key, in_features, out_features):
    """Mirrors the PyTorch module: weights ~ Normal(0,1) (nn.init.normal_),
    biases keep nn.Linear default Uniform(-1/sqrt(fan_in), 1/sqrt(fan_in)).
    Weights are stored transposed as (in, out), un-padded, bf16 for the MXU.
    NOTE: bf16 weights/activations introduce ~0.5-1% relative error vs. the
    true f32 PyTorch model (fine for DQN inference)."""
    dims = [(in_features, H1), (H1, H2), (H2, H3), (H3, out_features)]
    params = {}
    keys = jax.random.split(key, 2 * len(dims))
    for i, (fan_in, fan_out) in enumerate(dims):
        wk, bk = keys[2 * i], keys[2 * i + 1]
        w_t = jax.random.normal(wk, (fan_in, fan_out), dtype=jnp.float32)
        bound = 1.0 / jnp.sqrt(jnp.float32(fan_in))
        b = jax.random.uniform(bk, (fan_out,), minval=-bound, maxval=bound,
                               dtype=jnp.float32)
        params[f"w{i+1}"] = w_t.astype(jnp.bfloat16)     # bf16 MXU operand
        params[f"b{i+1}"] = b.reshape(1, fan_out)        # bias stays f32
    return params


def dqn_forward(x, params):
    """x: (B, in_features) f32. Returns (B, out_features) f32."""
    B, F = x.shape
    out_features = params["w4"].shape[1]

    # Adaptive batch tiling: tiny single tile for the action-selection path,
    # 1024-row tiles (>=2 grid steps -> both v7x TCs busy) for big batches.
    if B <= SMALL_BATCH_CAP:
        tile_b = max(_round_up(B, 8), 8)
        B_pad = tile_b
    else:
        tile_b = LARGE_TILE_B
        B_pad = _round_up(B, tile_b)

    if B_pad != B:
        xp = jnp.zeros((B_pad, F), x.dtype).at[:B].set(x)   # sublane-only padding
    else:
        xp = x                                               # no wrapper copy at all

    grid = (B_pad // tile_b,)

    def resident(arr):
        # Same block every grid step -> DMA'd once, stays VMEM-resident.
        return pl.BlockSpec(arr.shape, lambda i: (0, 0))

    in_specs = [
        pl.BlockSpec((tile_b, F), lambda i: (i, 0)),   # x tile, pipelined over batch
        resident(params["w1"]), resident(params["b1"]),
        resident(params["w2"]), resident(params["b2"]),
        resident(params["w3"]), resident(params["b3"]),
        resident(params["w4"]), resident(params["b4"]),
    ]
    out_specs = pl.BlockSpec((tile_b, out_features), lambda i: (i, 0))

    y_pad = pl.pallas_call(
        dqn_mlp_kernel,
        out_shape=jax.ShapeDtypeStruct((B_pad, out_features), jnp.float32),
        grid=grid,
        in_specs=in_specs,
        out_specs=out_specs,
        compiler_params=pltpu.CompilerParams(
            dimension_semantics=("parallel",),   # batch tiles shard across v7x's 2 TCs
        ),
    )(xp,
      params["w1"], params["b1"],
      params["w2"], params["b2"],
      params["w3"], params["b3"],
      params["w4"], params["b4"])

    return y_pad[:B] if B_pad != B else y_pad


def dqn_reference(x, params):
    """Pure-JAX reference with identical numerics (bf16 operands, f32 accum)."""
    h = x.astype(jnp.bfloat16)
    for i in range(1, 4):
        h = jnp.dot(h, params[f"w{i}"], preferred_element_type=jnp.float32) \
            + params[f"b{i}"]
        h = jnp.maximum(h, 0.0).astype(jnp.bfloat16)
    return jnp.dot(h, params["w4"], preferred_element_type=jnp.float32) + params["b4"]


if __name__ == "__main__":
    key = jax.random.PRNGKey(0)
    pkey, xkey = jax.random.split(key)

    batch = 2
    in_features = 32    # DQNModel(input=32, output=8)
    out_features = 8

    params = init_dqn_params(pkey, in_features, out_features)
    x = jax.random.normal(xkey, (batch, in_features), dtype=jnp.float32)

    y = dqn_forward(x, params)
    jax.block_until_ready(y)

    y_ref = dqn_reference(x, params)
    assert y.shape == (batch, out_features)
    assert jnp.allclose(y, y_ref, rtol=2e-2, atol=1e-1), (
        f"max abs diff {jnp.max(jnp.abs(y - y_ref))}")

    print("KERNEL_OK")
</pallas_src>

<mosaic_0001>
module attributes {stable_mosaic.version = 11 : i64} {
  func.func @dqn_mlp_kernel(%arg0: i32, %arg1: memref<8x32xf32, #tpu.memory_space<vmem>>, %arg2: memref<32x256xbf16, #tpu.memory_space<vmem>>, %arg3: memref<1x256xf32, #tpu.memory_space<vmem>>, %arg4: memref<256x128xbf16, #tpu.memory_space<vmem>>, %arg5: memref<1x128xf32, #tpu.memory_space<vmem>>, %arg6: memref<128x64xbf16, #tpu.memory_space<vmem>>, %arg7: memref<1x64xf32, #tpu.memory_space<vmem>>, %arg8: memref<64x8xbf16, #tpu.memory_space<vmem>>, %arg9: memref<1x8xf32, #tpu.memory_space<vmem>>, %arg10: memref<8x8xf32, #tpu.memory_space<vmem>>) attributes {dimension_semantics = [#tpu.dimension_semantics<parallel>], iteration_bounds = array<i64: 1>, scalar_prefetch = 0 : i64, scratch_operands = 0 : i64, tpu.core_type = #tpu.core_type<tc>, window_params = [{transform_indices = @transform_0, window_bounds = array<i64: 8, 32>}, {pipeline_mode = #tpu.pipeline_mode<synchronous>, transform_indices = @transform_1, window_bounds = array<i64: 32, 256>}, {pipeline_mode = #tpu.pipeline_mode<synchronous>, transform_indices = @transform_2, window_bounds = array<i64: 1, 256>}, {pipeline_mode = #tpu.pipeline_mode<synchronous>, transform_indices = @transform_3, window_bounds = array<i64: 256, 128>}, {pipeline_mode = #tpu.pipeline_mode<synchronous>, transform_indices = @transform_4, window_bounds = array<i64: 1, 128>}, {pipeline_mode = #tpu.pipeline_mode<synchronous>, transform_indices = @transform_5, window_bounds = array<i64: 128, 64>}, {pipeline_mode = #tpu.pipeline_mode<synchronous>, transform_indices = @transform_6, window_bounds = array<i64: 1, 64>}, {pipeline_mode = #tpu.pipeline_mode<synchronous>, transform_indices = @transform_7, window_bounds = array<i64: 64, 8>}, {pipeline_mode = #tpu.pipeline_mode<synchronous>, transform_indices = @transform_8, window_bounds = array<i64: 1, 8>}, {transform_indices = @transform_9, window_bounds = array<i64: 8, 8>}]} {
    %c0 = arith.constant 0 : index
    %c0_0 = arith.constant 0 : index
    %0 = vector.load %arg1[%c0, %c0_0] : memref<8x32xf32, #tpu.memory_space<vmem>>, vector<8x32xf32>
    %1 = arith.truncf %0 : vector<8x32xf32> to vector<8x32xbf16>
    %c0_1 = arith.constant 0 : index
    %c0_2 = arith.constant 0 : index
    %2 = vector.load %arg2[%c0_1, %c0_2] : memref<32x256xbf16, #tpu.memory_space<vmem>>, vector<32x256xbf16>
    %cst = arith.constant dense<0.000000e+00> : vector<8x256xf32>
    %3 = tpu.matmul %1, %2, %cst {dimension_numbers = #tpu.dot_dimension_numbers<[1], [0], [0], [1], [0, 0, 1, 1], [], []>} : vector<8x32xbf16>, vector<32x256xbf16>, vector<8x256xf32> -> vector<8x256xf32>
    %c0_3 = arith.constant 0 : index
    %c0_4 = arith.constant 0 : index
    %4 = vector.load %arg3[%c0_3, %c0_4] : memref<1x256xf32, #tpu.memory_space<vmem>>, vector<1x256xf32>
    %5 = vector.broadcast %4 : vector<1x256xf32> to vector<8x256xf32>
    %6 = arith.addf %3, %5 : vector<8x256xf32>
    %cst_5 = arith.constant 0.000000e+00 : f32
    %7 = vector.broadcast %cst_5 : f32 to vector<8x256xf32>
    %8 = arith.maximumf %6, %7 : vector<8x256xf32>
    %9 = arith.truncf %8 : vector<8x256xf32> to vector<8x256xbf16>
    %c0_6 = arith.constant 0 : index
    %c0_7 = arith.constant 0 : index
    %10 = vector.load %arg4[%c0_6, %c0_7] : memref<256x128xbf16, #tpu.memory_space<vmem>>, vector<256x128xbf16>
    %cst_8 = arith.constant dense<0.000000e+00> : vector<8x128xf32>
    %11 = tpu.matmul %9, %10, %cst_8 {dimension_numbers = #tpu.dot_dimension_numbers<[1], [0], [0], [1], [0, 0, 1, 1], [], []>} : vector<8x256xbf16>, vector<256x128xbf16>, vector<8x128xf32> -> vector<8x128xf32>
    %c0_9 = arith.constant 0 : index
    %c0_10 = arith.constant 0 : index
    %12 = vector.load %arg5[%c0_9, %c0_10] : memref<1x128xf32, #tpu.memory_space<vmem>>, vector<1x128xf32>
    %13 = vector.broadcast %12 : vector<1x128xf32> to vector<8x128xf32>
    %14 = arith.addf %11, %13 : vector<8x128xf32>
    %cst_11 = arith.constant 0.000000e+00 : f32
    %15 = vector.broadcast %cst_11 : f32 to vector<8x128xf32>
    %16 = arith.maximumf %14, %15 : vector<8x128xf32>
    %17 = arith.truncf %16 : vector<8x128xf32> to vector<8x128xbf16>
    %c0_12 = arith.constant 0 : index
    %c0_13 = arith.constant 0 : index
    %18 = vector.load %arg6[%c0_12, %c0_13] : memref<128x64xbf16, #tpu.memory_space<vmem>>, vector<128x64xbf16>
    %cst_14 = arith.constant dense<0.000000e+00> : vector<8x64xf32>
    %19 = tpu.matmul %17, %18, %cst_14 {dimension_numbers = #tpu.dot_dimension_numbers<[1], [0], [0], [1], [0, 0, 1, 1], [], []>} : vector<8x128xbf16>, vector<128x64xbf16>, vector<8x64xf32> -> vector<8x64xf32>
    %c0_15 = arith.constant 0 : index
    %c0_16 = arith.constant 0 : index
    %20 = vector.load %arg7[%c0_15, %c0_16] : memref<1x64xf32, #tpu.memory_space<vmem>>, vector<1x64xf32>
    %21 = vector.broadcast %20 : vector<1x64xf32> to vector<8x64xf32>
    %22 = arith.addf %19, %21 : vector<8x64xf32>
    %cst_17 = arith.constant 0.000000e+00 : f32
    %23 = vector.broadcast %cst_17 : f32 to vector<8x64xf32>
    %24 = arith.maximumf %22, %23 : vector<8x64xf32>
    %25 = arith.truncf %24 : vector<8x64xf32> to vector<8x64xbf16>
    %c0_18 = arith.constant 0 : index
    %c0_19 = arith.constant 0 : index
    %26 = vector.load %arg8[%c0_18, %c0_19] : memref<64x8xbf16, #tpu.memory_space<vmem>>, vector<64x8xbf16>
    %cst_20 = arith.constant dense<0.000000e+00> : vector<8x8xf32>
    %27 = tpu.matmul %25, %26, %cst_20 {dimension_numbers = #tpu.dot_dimension_numbers<[1], [0], [0], [1], [0, 0, 1, 1], [], []>} : vector<8x64xbf16>, vector<64x8xbf16>, vector<8x8xf32> -> vector<8x8xf32>
    %c0_21 = arith.constant 0 : index
    %c0_22 = arith.constant 0 : index
    %28 = vector.load %arg9[%c0_21, %c0_22] : memref<1x8xf32, #tpu.memory_space<vmem>>, vector<1x8xf32>
    %29 = vector.broadcast %28 : vector<1x8xf32> to vector<8x8xf32>
    %30 = arith.addf %27, %29 : vector<8x8xf32>
    %c0_23 = arith.constant 0 : index
    %c0_24 = arith.constant 0 : index
    %31 = vector.load %arg10[%c0_23, %c0_24] : memref<8x8xf32, #tpu.memory_space<vmem>>, vector<8x8xf32>
    tpu.vector_store %arg10[%c0_23, %c0_24], %30 {strides = array<i32>} : memref<8x8xf32, #tpu.memory_space<vmem>>, vector<8x8xf32>,
    return
  }
  func.func @transform_0(%arg0: i32) -> (i32, i32) {
    %c0_i32 = arith.constant 0 : i32
    %c0_i32_0 = arith.constant 0 : i32
    return %arg0, %c0_i32 : i32, i32
  }
  func.func @transform_1(%arg0: i32) -> (i32, i32) {
    %c0_i32 = arith.constant 0 : i32
    %c0_i32_0 = arith.constant 0 : i32
    %c0_i32_1 = arith.constant 0 : i32
    return %c0_i32, %c0_i32_0 : i32, i32
  }
  func.func @transform_2(%arg0: i32) -> (i32, i32) {
    %c0_i32 = arith.constant 0 : i32
    %c0_i32_0 = arith.constant 0 : i32
    %c0_i32_1 = arith.constant 0 : i32
    return %c0_i32, %c0_i32_0 : i32, i32
  }
  func.func @transform_3(%arg0: i32) -> (i32, i32) {
    %c0_i32 = arith.constant 0 : i32
    %c0_i32_0 = arith.constant 0 : i32
    %c0_i32_1 = arith.constant 0 : i32
    return %c0_i32, %c0_i32_0 : i32, i32
  }
  func.func @transform_4(%arg0: i32) -> (i32, i32) {
    %c0_i32 = arith.constant 0 : i32
    %c0_i32_0 = arith.constant 0 : i32
    %c0_i32_1 = arith.constant 0 : i32
    return %c0_i32, %c0_i32_0 : i32, i32
  }
  func.func @transform_5(%arg0: i32) -> (i32, i32) {
    %c0_i32 = arith.constant 0 : i32
    %c0_i32_0 = arith.constant 0 : i32
    %c0_i32_1 = arith.constant 0 : i32
    return %c0_i32, %c0_i32_0 : i32, i32
  }
  func.func @transform_6(%arg0: i32) -> (i32, i32) {
    %c0_i32 = arith.constant 0 : i32
    %c0_i32_0 = arith.constant 0 : i32
    %c0_i32_1 = arith.constant 0 : i32
    return %c0_i32, %c0_i32_0 : i32, i32
  }
  func.func @transform_7(%arg0: i32) -> (i32, i32) {
    %c0_i32 = arith.constant 0 : i32
    %c0_i32_0 = arith.constant 0 : i32
    %c0_i32_1 = arith.constant 0 : i32
    return %c0_i32, %c0_i32_0 : i32, i32
  }
  func.func @transform_8(%arg0: i32) -> (i32, i32) {
    %c0_i32 = arith.constant 0 : i32
    %c0_i32_0 = arith.constant 0 : i32
    %c0_i32_1 = arith.constant 0 : i32
    return %c0_i32, %c0_i32_0 : i32, i32
  }
  func.func @transform_9(%arg0: i32) -> (i32, i32) {
    %c0_i32 = arith.constant 0 : i32
    %c0_i32_0 = arith.constant 0 : i32
    return %arg0, %c0_i32 : i32, i32
  }
}

</mosaic_0001>

<llo_original>
// kernel: tpu_custom_call.1
$region0: #{tpu_custom_call.1}
  #allocation0 [shape = 'u32[]', space=smem, size = 0x4, offset = 0x4, fixed_abs, tag = 'smem constant byte address 0x4 - core index']
  #allocation1 [shape = 'u32[144,128]{1,0:T(1,128)}', space=vmem, size = 0x12000, scoped, tag = 'internal scratch']
  %s0 = inlined_call_operand.vmem [shape: f32[8,32], index: 0, kind: input, shape index: {}]
  %s1 = inlined_call_operand.hbm [shape: bf16[32,256], index: 1, kind: input, shape index: {}]
  %s2 = inlined_call_operand.hbm [shape: f32[1,256], index: 2, kind: input, shape index: {}]
  %s3 = inlined_call_operand.vmem [shape: bf16[256,128], index: 3, kind: input, shape index: {}]
  %s4 = inlined_call_operand.vmem [shape: f32[1,128], index: 4, kind: input, shape index: {}]
  %s5 = inlined_call_operand.vmem [shape: bf16[128,64], index: 5, kind: input, shape index: {}]
  %s6 = inlined_call_operand.vmem [shape: f32[1,64], index: 6, kind: input, shape index: {}]
  %s7 = inlined_call_operand.vmem [shape: bf16[64,8], index: 7, kind: input, shape index: {}]
  %s8 = inlined_call_operand.vmem [shape: f32[1,8], index: 8, kind: input, shape index: {}]
  %s9 = inlined_call_operand.hbm [shape: f32[8,8], index: 9, kind: output, shape index: {}]
  %s10 = sld [smem:[#allocation0]]
  $region54: #{tpu_custom_call.1} parent=0
    _
  %s12 = ssub.s32 1, %s10
  %s13 = scalar_select 0, %s12, %s10
  $region1: #{tpu_custom_call.1} parent=0
    #allocation2 [shape = 'u8[16384]{0}', space=vmem, size = 0x4000, scoped, tag = 'input window, operand 1, single buffered']
    #allocation3 [shape = 's32[1]{0}', space=sflag, size = 0x4, scoped, tag = 'scoped memory for tpu_custom_call.1']
    #allocation4 [shape = 's32[1]{0}', space=sflag, size = 0x4, scoped, tag = 'scoped memory for tpu_custom_call.1']
    #allocation5 [shape = 'u8[1024]{0}', space=vmem, size = 0x400, scoped, tag = 'input window, operand 2, single buffered']
    #allocation6 [shape = 's32[1]{0}', space=sflag, size = 0x4, scoped, tag = 'scoped memory for tpu_custom_call.1']
    #allocation7 [shape = 'u8[4096]{0}', space=vmem, size = 0x1000, scoped, tag = 'output window, operand 0, single buffered']
    %14 = vsyncpa [#allocation3], 0
    %15 = vsyncpa [#allocation6], 0
    %16 = vsyncpa [#allocation4], 0
    // Predicated region
    $region2: #{tpu_custom_call.1} parent=1 // pred_check
      _
    $region3: #{tpu_custom_call.1} parent=1 // pred_check_branch
      %18 = sbr.rel (0) target = $region5
    $region4: #{tpu_custom_call.1} parent=1 // pred_region
      _
    $region5: #{tpu_custom_call.1} parent=1 // pred_fallthru
      _
    // Predicated region
    $region6: #{tpu_custom_call.1} parent=1 // pred_check
      _
    $region7: #{tpu_custom_call.1} parent=1 // pred_check_branch
      %20 = sbr.rel (0) target = $region9
    $region8: #{tpu_custom_call.1} parent=1 // pred_region
      %s22 = ssub.s32 512, 512
      %23 = vsyncadd [#allocation3], %s22
      %s24 = sshll.u32 [#allocation2], 4
      %s25 = int_to_ptr.vmem [resolvable:$true] %s24
      %30 = dma.hbm_to_vmem [thread:$0]  %s1, 512, %s25, [#allocation3], 128, 128, 8
    $region9: #{tpu_custom_call.1} parent=1 // pred_fallthru
      _
    // Predicated region
    $region10: #{tpu_custom_call.1} parent=1 // pred_check
      _
    $region11: #{tpu_custom_call.1} parent=1 // pred_check_branch
      %32 = sbr.rel (0) target = $region13
    $region12: #{tpu_custom_call.1} parent=1 // pred_region
      %s34 = ssub.s32 32, 32
      %35 = vsyncadd [#allocation6], %s34
      %s37 = sshll.u32 [#allocation5], 4
      %s38 = int_to_ptr.vmem [resolvable:$true] %s37
      %40 = dma.hbm_to_vmem [thread:$0]  %s2, 32, %s38, [#allocation6]
    $region13: #{tpu_custom_call.1} parent=1 // pred_fallthru
      _
    // Predicated region
    $region14: #{tpu_custom_call.1} parent=1 // pred_check
      _
    $region15: #{tpu_custom_call.1} parent=1 // pred_check_branch
      %42 = sbr.rel (0) target = $region17
    $region16: #{tpu_custom_call.1} parent=1 // pred_region
      _
    $region17: #{tpu_custom_call.1} parent=1 // pred_fallthru
      _
    // Predicated region
    $region18: #{tpu_custom_call.1} parent=1 // pred_check
      _
    $region19: #{tpu_custom_call.1} parent=1 // pred_check_branch
      %44 = sbr.rel (0) target = $region21
    $region20: #{tpu_custom_call.1} parent=1 // pred_region
      _
    $region21: #{tpu_custom_call.1} parent=1 // pred_fallthru
      _
    // Predicated region
    $region22: #{tpu_custom_call.1} parent=1 // pred_check
      _
    $region23: #{tpu_custom_call.1} parent=1 // pred_check_branch
      %46 = sbr.rel (0) target = $region25
    $region24: #{tpu_custom_call.1} parent=1 // pred_region
      _
    $region25: #{tpu_custom_call.1} parent=1 // pred_fallthru
      _
    // Predicated region
    $region26: #{tpu_custom_call.1} parent=1 // pred_check
      _
    $region27: #{tpu_custom_call.1} parent=1 // pred_check_branch
      %48 = sbr.rel (0) target = $region29
    $region28: #{tpu_custom_call.1} parent=1 // pred_region
      _
    $region29: #{tpu_custom_call.1} parent=1 // pred_fallthru
      _
    // Predicated region
    $region30: #{tpu_custom_call.1} parent=1 // pred_check
      _
    $region31: #{tpu_custom_call.1} parent=1 // pred_check_branch
      %50 = sbr.rel (0) target = $region33
    $region32: #{tpu_custom_call.1} parent=1 // pred_region
      _
    $region33: #{tpu_custom_call.1} parent=1 // pred_fallthru
      _
    // Predicated region
    $region34: #{tpu_custom_call.1} parent=1 // pred_check
      _
    $region35: #{tpu_custom_call.1} parent=1 // pred_check_branch
      %52 = sbr.rel (0) target = $region37
    $region36: #{tpu_custom_call.1} parent=1 // pred_region
      _
    $region37: #{tpu_custom_call.1} parent=1 // pred_fallthru
      _
    // Predicated region
    $region38: #{tpu_custom_call.1} parent=1 // pred_check
      _
    $region39: #{tpu_custom_call.1} parent=1 // pred_check_branch
      %54 = sbr.rel (0) target = $region41
    $region40: #{tpu_custom_call.1} parent=1 // pred_region
      %55 = dma.done [#allocation3], 512
    $region41: #{tpu_custom_call.1} parent=1 // pred_fallthru
      _
    // Predicated region
    $region42: #{tpu_custom_call.1} parent=1 // pred_check
      _
    $region43: #{tpu_custom_call.1} parent=1 // pred_check_branch
      %57 = sbr.rel (0) target = $region45
    $region44: #{tpu_custom_call.1} parent=1 // pred_region
      %58 = dma.done [#allocation6], 32
    $region45: #{tpu_custom_call.1} parent=1 // pred_fallthru
      _
    %v60 = vld [vmem:[%s0] sm:$0xff]
    %v61 = vpack.c.bf16 %v60, %v60
    %v62 = vld [vmem:[#allocation2] sm:$0xff]
    %v63 = vld [vmem:[#allocation2 + $0x8] sm:$0xff]
    %v64 = vld [vmem:[#allocation2 + $0x10] sm:$0xff]
    %v65 = vld [vmem:[#allocation2 + $0x18] sm:$0xff]
    %v66 = vld [vmem:[#allocation5] sm:$0x3]
    %v68 = vlaneseq
    %v69 = vshrl.u32 %v68, 7
    %v70 = vsub.s32 0, %v69
    %v71 = vrot.slane %v66, %v70
    %v72 = vlaneseq
    %v73 = vshrl.u32 %v72, 7
    %v74 = vsub.s32 1, %v73
    %v75 = vrot.slane %v66, %v74
    %v82 = vunpack.c.l.b16 %v62
    %v83 = vunpack.c.h.b16 %v62
    %v84 = vunpack.c.l.b16 %v63
    %v85 = vunpack.c.h.b16 %v63
    %v86 = vunpack.c.l.b16 %v64
    %v87 = vunpack.c.h.b16 %v64
    %v88 = vunpack.c.l.b16 %v65
    %v89 = vunpack.c.h.b16 %v65
    %v90 = vpack.c.b16 %v84, %v82
    %v91 = vpack.c.b16 %v85, %v83
    %v92 = vpack.c.b16 %v88, %v86
    %v93 = vpack.c.b16 %v89, %v87
    %vm98 = vcmask 261120
    %v100 = vsel %vm98, %v61, 0
    %102 = vmatprep.subr.bf16.mxu0 0
    %103 = vmatpush1.bf16.msra.mxu0 0
    %104 = vmatprep.subr.bf16.mxu0 0
    %105 = vmatpush1.bf16.msra.mxu0 0
    %106 = vmatprep.subr.bf16.mxu0 0
    %107 = vmatpush1.bf16.msra.mxu0 0
    %108 = vmatprep.subr.bf16.mxu0 0
    %109 = vmatpush1.bf16.msra.mxu0 0
    %110 = vmatprep.subr.bf16.mxu0 0
    %111 = vmatpush1.bf16.msra.mxu0 0
    %112 = vmatprep.subr.bf16.mxu0 0
    %113 = vmatpush1.bf16.msra.mxu0 0
    %114 = vmatprep.subr.bf16.mxu0 %v93
    %115 = vmatpush1.bf16.msra.mxu0 %v92
    %116 = vmatprep.subr.bf16.mxu0 %v91
    %117 = vmatpush1.bf16.msra.mxu0 %v90
    %118 = vmatprep.subr.bf16.mxu0 0
    %119 = vmatpush2.bf16.msra.mxu0 0
    %120 = vmatprep.subr.bf16.mxu0 0
    %121 = vmatpush2.bf16.msra.mxu0 0
    %122 = vmatprep.subr.bf16.mxu0 0
    %123 = vmatpush2.bf16.msra.mxu0 0
    %124 = vmatprep.subr.bf16.mxu0 0
    %125 = vmatpush2.bf16.msra.mxu0 0
    %126 = vmatprep.subr.bf16.mxu0 0
    %127 = vmatpush2.bf16.msra.mxu0 0
    %128 = vmatprep.subr.bf16.mxu0 0
    %129 = vmatpush2.bf16.msra.mxu0 0
    %130 = vmatprep.subr.bf16.mxu0 0
    %131 = vmatpush2.bf16.msra.mxu0 0
    %132 = vmatprep.subr.bf16.mxu0 0
    %133 = vmatpush2.bf16.msra.mxu0 0
    %134 = vmatprep.mubr.bf16.mxu0 0
    %135 = vmatmul.mubr.bf16.gmra.mxu0 %v100
    %v136 = vpop.f32.mrf.mxu0
    %v137 = vadd.f32 %v71, %v136
    %v138 = vpop.f32.mrf.mxu0
    %v139 = vadd.f32 %v75, %v138
    %v140 = vpop.f32.mrf.mxu0
    %v141 = vpop.f32.mrf.mxu0
    %142 = vdwg.mxu0
    %v143 = vmax.f32 %v137, 0.0
    %v144 = vmax.f32 %v139, 0.0
    %v145 = vpack.c.bf16 %v143, %v143
    %v146 = vpack.c.bf16 %v144, %v144
    %v147 = vld [vmem:[%s3] sm:$0xf]
    %v148 = vld [vmem:[%s3 + $0x4] sm:$0xf]
    %v149 = vld [vmem:[%s3 + $0x8] sm:$0xf]
    %v150 = vld [vmem:[%s3 + $0xc] sm:$0xf]
    %v151 = vld [vmem:[%s3 + $0x10] sm:$0xf]
    %v152 = vld [vmem:[%s3 + $0x14] sm:$0xf]
    %v153 = vld [vmem:[%s3 + $0x18] sm:$0xf]
    %v154 = vld [vmem:[%s3 + $0x1c] sm:$0xf]
    %v155 = vld [vmem:[%s3 + $0x20] sm:$0xf]
    %v156 = vld [vmem:[%s3 + $0x24] sm:$0xf]
    %v157 = vld [vmem:[%s3 + $0x28] sm:$0xf]
    %v158 = vld [vmem:[%s3 + $0x2c] sm:$0xf]
    %v159 = vld [vmem:[%s3 + $0x30] sm:$0xf]
    %v160 = vld [vmem:[%s3 + $0x34] sm:$0xf]
    %v161 = vld [vmem:[%s3 + $0x38] sm:$0xf]
    %v162 = vld [vmem:[%s3 + $0x3c] sm:$0xf]
    %v163 = vld [vmem:[%s3 + $0x40] sm:$0xf]
    %v164 = vld [vmem:[%s3 + $0x44] sm:$0xf]
    %v165 = vld [vmem:[%s3 + $0x48] sm:$0xf]
    %v166 = vld [vmem:[%s3 + $0x4c] sm:$0xf]
    %v167 = vld [vmem:[%s3 + $0x50] sm:$0xf]
    %v168 = vld [vmem:[%s3 + $0x54] sm:$0xf]
    %v169 = vld [vmem:[%s3 + $0x58] sm:$0xf]
    %v170 = vld [vmem:[%s3 + $0x5c] sm:$0xf]
    %v171 = vld [vmem:[%s3 + $0x60] sm:$0xf]
    %v172 = vld [vmem:[%s3 + $0x64] sm:$0xf]
    %v173 = vld [vmem:[%s3 + $0x68] sm:$0xf]
    %v174 = vld [vmem:[%s3 + $0x6c] sm:$0xf]
    %v175 = vld [vmem:[%s3 + $0x70] sm:$0xf]
    %v176 = vld [vmem:[%s3 + $0x74] sm:$0xf]
    %v177 = vld [vmem:[%s3 + $0x78] sm:$0xf]
    %v178 = vld [vmem:[%s3 + $0x7c] sm:$0xf]
    %v179 = vld [vmem:[%s4] sm:$0x1]
    %v181 = vlaneseq
    %v182 = vshrl.u32 %v181, 7
    %v183 = vsub.s32 0, %v182
    %v184 = vrot.slane %v179, %v183
    %v218 = vunpack.c.l.b16 %v147
    %v219 = vunpack.c.l.b16 %v148
    %v220 = vunpack.c.l.b16 %v149
    %v221 = vunpack.c.l.b16 %v150
    %v222 = vunpack.c.l.b16 %v151
    %v223 = vunpack.c.l.b16 %v152
    %v224 = vunpack.c.l.b16 %v153
    %v225 = vunpack.c.l.b16 %v154
    %v226 = vunpack.c.l.b16 %v155
    %v227 = vunpack.c.l.b16 %v156
    %v228 = vunpack.c.l.b16 %v157
    %v229 = vunpack.c.l.b16 %v158
    %v230 = vunpack.c.l.b16 %v159
    %v231 = vunpack.c.l.b16 %v160
    %v232 = vunpack.c.l.b16 %v161
    %v233 = vunpack.c.l.b16 %v162
    %v234 = vunpack.c.l.b16 %v163
    %v235 = vunpack.c.l.b16 %v164
    %v236 = vunpack.c.l.b16 %v165
    %v237 = vunpack.c.l.b16 %v166
    %v238 = vunpack.c.l.b16 %v167
    %v239 = vunpack.c.l.b16 %v168
    %v240 = vunpack.c.l.b16 %v169
    %v241 = vunpack.c.l.b16 %v170
    %v242 = vunpack.c.l.b16 %v171
    %v243 = vunpack.c.l.b16 %v172
    %v244 = vunpack.c.l.b16 %v173
    %v245 = vunpack.c.l.b16 %v174
    %v246 = vunpack.c.l.b16 %v175
    %v247 = vunpack.c.l.b16 %v176
    %v248 = vunpack.c.l.b16 %v177
    %v249 = vunpack.c.l.b16 %v178
    %v250 = vpack.c.b16 %v219, %v218
    %v251 = vpack.c.b16 %v221, %v220
    %v252 = vpack.c.b16 %v223, %v222
    %v253 = vpack.c.b16 %v225, %v224
    %v254 = vpack.c.b16 %v227, %v226
    %v255 = vpack.c.b16 %v229, %v228
    %v256 = vpack.c.b16 %v231, %v230
    %v257 = vpack.c.b16 %v233, %v232
    %v258 = vpack.c.b16 %v235, %v234
    %v259 = vpack.c.b16 %v237, %v236
    %v260 = vpack.c.b16 %v239, %v238
    %v261 = vpack.c.b16 %v241, %v240
    %v262 = vpack.c.b16 %v243, %v242
    %v263 = vpack.c.b16 %v245, %v244
    %v264 = vpack.c.b16 %v247, %v246
    %v265 = vpack.c.b16 %v249, %v248
    %282 = vmatprep.subr.bf16.mxu0 0
    %283 = vmatpush1.bf16.msra.mxu0 %v257
    %284 = vmatprep.subr.bf16.mxu0 0
    %285 = vmatpush1.bf16.msra.mxu0 %v256
    %286 = vmatprep.subr.bf16.mxu0 0
    %287 = vmatpush1.bf16.msra.mxu0 %v255
    %288 = vmatprep.subr.bf16.mxu0 0
    %289 = vmatpush1.bf16.msra.mxu0 %v254
    %290 = vmatprep.subr.bf16.mxu0 0
    %291 = vmatpush1.bf16.msra.mxu0 %v253
    %292 = vmatprep.subr.bf16.mxu0 0
    %293 = vmatpush1.bf16.msra.mxu0 %v252
    %294 = vmatprep.subr.bf16.mxu0 0
    %295 = vmatpush1.bf16.msra.mxu0 %v251
    %296 = vmatprep.subr.bf16.mxu0 0
    %297 = vmatpush1.bf16.msra.mxu0 %v250
    %298 = vmatprep.subr.bf16.mxu0 0
    %299 = vmatpush2.bf16.msra.mxu0 %v265
    %300 = vmatprep.subr.bf16.mxu0 0
    %301 = vmatpush2.bf16.msra.mxu0 %v264
    %302 = vmatprep.subr.bf16.mxu0 0
    %303 = vmatpush2.bf16.msra.mxu0 %v263
    %304 = vmatprep.subr.bf16.mxu0 0
    %305 = vmatpush2.bf16.msra.mxu0 %v262
    %306 = vmatprep.subr.bf16.mxu0 0
    %307 = vmatpush2.bf16.msra.mxu0 %v261
    %308 = vmatprep.subr.bf16.mxu0 0
    %309 = vmatpush2.bf16.msra.mxu0 %v260
    %310 = vmatprep.subr.bf16.mxu0 0
    %311 = vmatpush2.bf16.msra.mxu0 %v259
    %312 = vmatprep.subr.bf16.mxu0 0
    %313 = vmatpush2.bf16.msra.mxu0 %v258
    %314 = vmatprep.mubr.bf16.mxu0 %v146
    %315 = vmatmul.mubr.bf16.gmra.mxu0 %v145
    %v316 = vpop.f32.mrf.mxu0
    %v317 = vadd.f32 %v184, %v316
    %v318 = vpop.f32.mrf.mxu0
    %v319 = vpop.f32.mrf.mxu0
    %v320 = vpop.f32.mrf.mxu0
    %321 = vdwg.mxu0
    %v322 = vmax.f32 %v317, 0.0
    %v323 = vpack.c.bf16 %v322, %v322
    %v324 = vld [vmem:[%s5] sm:$0xf]
    %v325 = vld [vmem:[%s5 + $0x4] sm:$0xf]
    %v326 = vld [vmem:[%s5 + $0x8] sm:$0xf]
    %v327 = vld [vmem:[%s5 + $0xc] sm:$0xf]
    %v328 = vld [vmem:[%s5 + $0x10] sm:$0xf]
    %v329 = vld [vmem:[%s5 + $0x14] sm:$0xf]
    %v330 = vld [vmem:[%s5 + $0x18] sm:$0xf]
    %v331 = vld [vmem:[%s5 + $0x1c] sm:$0xf]
    %v332 = vld [vmem:[%s5 + $0x20] sm:$0xf]
    %v333 = vld [vmem:[%s5 + $0x24] sm:$0xf]
    %v334 = vld [vmem:[%s5 + $0x28] sm:$0xf]
    %v335 = vld [vmem:[%s5 + $0x2c] sm:$0xf]
    %v336 = vld [vmem:[%s5 + $0x30] sm:$0xf]
    %v337 = vld [vmem:[%s5 + $0x34] sm:$0xf]
    %v338 = vld [vmem:[%s5 + $0x38] sm:$0xf]
    %v339 = vld [vmem:[%s5 + $0x3c] sm:$0xf]
    %v340 = vld [vmem:[%s6] sm:$0x1]
    %v342 = vlaneseq
    %v343 = vshrl.u32 %v342, 7
    %v344 = vsub.s32 0, %v343
    %v345 = vrot.slane %v340, %v344
    %v363 = vunpack.c.l.b16 %v324
    %v364 = vunpack.c.l.b16 %v325
    %v365 = vunpack.c.l.b16 %v326
    %v366 = vunpack.c.l.b16 %v327
    %v367 = vunpack.c.l.b16 %v328
    %v368 = vunpack.c.l.b16 %v329
    %v369 = vunpack.c.l.b16 %v330
    %v370 = vunpack.c.l.b16 %v331
    %v371 = vunpack.c.l.b16 %v332
    %v372 = vunpack.c.l.b16 %v333
    %v373 = vunpack.c.l.b16 %v334
    %v374 = vunpack.c.l.b16 %v335
    %v375 = vunpack.c.l.b16 %v336
    %v376 = vunpack.c.l.b16 %v337
    %v377 = vunpack.c.l.b16 %v338
    %v378 = vunpack.c.l.b16 %v339
    %v379 = vpack.c.b16 %v364, %v363
    %v380 = vpack.c.b16 %v366, %v365
    %v381 = vpack.c.b16 %v368, %v367
    %v382 = vpack.c.b16 %v370, %v369
    %v383 = vpack.c.b16 %v372, %v371
    %v384 = vpack.c.b16 %v374, %v373
    %v385 = vpack.c.b16 %v376, %v375
    %v386 = vpack.c.b16 %v378, %v377
    %395 = vmatprep.subr.bf16.mxu0 0
    %396 = vmatpush1.bf16.msra.mxu0 %v386
    %397 = vmatprep.subr.bf16.mxu0 0
    %398 = vmatpush1.bf16.msra.mxu0 %v385
    %399 = vmatprep.subr.bf16.mxu0 0
    %400 = vmatpush1.bf16.msra.mxu0 %v384
    %401 = vmatprep.subr.bf16.mxu0 0
    %402 = vmatpush1.bf16.msra.mxu0 %v383
    %403 = vmatprep.subr.bf16.mxu0 0
    %404 = vmatpush1.bf16.msra.mxu0 %v382
    %405 = vmatprep.subr.bf16.mxu0 0
    %406 = vmatpush1.bf16.msra.mxu0 %v381
    %407 = vmatprep.subr.bf16.mxu0 0
    %408 = vmatpush1.bf16.msra.mxu0 %v380
    %409 = vmatprep.subr.bf16.mxu0 0
    %410 = vmatpush1.bf16.msra.mxu0 %v379
    %411 = vmatprep.subr.bf16.mxu0 0
    %412 = vmatpush2.bf16.msra.mxu0 0
    %413 = vmatprep.subr.bf16.mxu0 0
    %414 = vmatpush2.bf16.msra.mxu0 0
    %415 = vmatprep.subr.bf16.mxu0 0
    %416 = vmatpush2.bf16.msra.mxu0 0
    %417 = vmatprep.subr.bf16.mxu0 0
    %418 = vmatpush2.bf16.msra.mxu0 0
    %419 = vmatprep.subr.bf16.mxu0 0
    %420 = vmatpush2.bf16.msra.mxu0 0
    %421 = vmatprep.subr.bf16.mxu0 0
    %422 = vmatpush2.bf16.msra.mxu0 0
    %423 = vmatprep.subr.bf16.mxu0 0
    %424 = vmatpush2.bf16.msra.mxu0 0
    %425 = vmatprep.subr.bf16.mxu0 0
    %426 = vmatpush2.bf16.msra.mxu0 0
    %427 = vmatprep.mubr.bf16.mxu0 0
    %428 = vmatmul.mubr.bf16.gmra.mxu0 %v323
    %v429 = vpop.f32.mrf.mxu0
    %v430 = vadd.f32 %v345, %v429
    %v431 = vpop.f32.mrf.mxu0
    %v432 = vpop.f32.mrf.mxu0
    %v433 = vpop.f32.mrf.mxu0
    %434 = vdwg.mxu0
    %v435 = vmax.f32 %v430, 0.0
    %v436 = vpack.c.bf16 %v435, %v435
    %v437 = vld [vmem:[%s7] sm:$0xf]
    %v438 = vld [vmem:[%s7 + $0x4] sm:$0xf]
    %v439 = vld [vmem:[%s7 + $0x8] sm:$0xf]
    %v440 = vld [vmem:[%s7 + $0xc] sm:$0xf]
    %v441 = vld [vmem:[%s7 + $0x10] sm:$0xf]
    %v442 = vld [vmem:[%s7 + $0x14] sm:$0xf]
    %v443 = vld [vmem:[%s7 + $0x18] sm:$0xf]
    %v444 = vld [vmem:[%s7 + $0x1c] sm:$0xf]
    %v445 = vld [vmem:[%s8] sm:$0x1]
    %v447 = vlaneseq
    %v448 = vshrl.u32 %v447, 7
    %v449 = vsub.s32 0, %v448
    %v450 = vrot.slane %v445, %v449
    %v460 = vunpack.c.l.b16 %v437
    %v461 = vunpack.c.l.b16 %v438
    %v462 = vunpack.c.l.b16 %v439
    %v463 = vunpack.c.l.b16 %v440
    %v464 = vunpack.c.l.b16 %v441
    %v465 = vunpack.c.l.b16 %v442
    %v466 = vunpack.c.l.b16 %v443
    %v467 = vunpack.c.l.b16 %v444
    %v468 = vpack.c.b16 %v461, %v460
    %v469 = vpack.c.b16 %v463, %v462
    %v470 = vpack.c.b16 %v465, %v464
    %v471 = vpack.c.b16 %v467, %v466
    %vm476 = vcmask 523264
    %v478 = vsel %vm476, %v436, 0
    %480 = vmatprep.subr.bf16.mxu0 0
    %481 = vmatpush1.bf16.msra.mxu0 0
    %482 = vmatprep.subr.bf16.mxu0 0
    %483 = vmatpush1.bf16.msra.mxu0 0
    %484 = vmatprep.subr.bf16.mxu0 0
    %485 = vmatpush1.bf16.msra.mxu0 0
    %486 = vmatprep.subr.bf16.mxu0 0
    %487 = vmatpush1.bf16.msra.mxu0 0
    %488 = vmatprep.subr.bf16.mxu0 0
    %489 = vmatpush1.bf16.msra.mxu0 %v471
    %490 = vmatprep.subr.bf16.mxu0 0
    %491 = vmatpush1.bf16.msra.mxu0 %v470
    %492 = vmatprep.subr.bf16.mxu0 0
    %493 = vmatpush1.bf16.msra.mxu0 %v469
    %494 = vmatprep.subr.bf16.mxu0 0
    %495 = vmatpush1.bf16.msra.mxu0 %v468
    %496 = vmatprep.subr.bf16.mxu0 0
    %497 = vmatpush2.bf16.msra.mxu0 0
    %498 = vmatprep.subr.bf16.mxu0 0
    %499 = vmatpush2.bf16.msra.mxu0 0
    %500 = vmatprep.subr.bf16.mxu0 0
    %501 = vmatpush2.bf16.msra.mxu0 0
    %502 = vmatprep.subr.bf16.mxu0 0
    %503 = vmatpush2.bf16.msra.mxu0 0
    %504 = vmatprep.subr.bf16.mxu0 0
    %505 = vmatpush2.bf16.msra.mxu0 0
    %506 = vmatprep.subr.bf16.mxu0 0
    %507 = vmatpush2.bf16.msra.mxu0 0
    %508 = vmatprep.subr.bf16.mxu0 0
    %509 = vmatpush2.bf16.msra.mxu0 0
    %510 = vmatprep.subr.bf16.mxu0 0
    %511 = vmatpush2.bf16.msra.mxu0 0
    %512 = vmatprep.mubr.bf16.mxu0 0
    %513 = vmatmul.mubr.bf16.gmra.mxu0 %v478
    %v514 = vpop.f32.mrf.mxu0
    %v515 = vadd.f32 %v450, %v514
    %v516 = vpop.f32.mrf.mxu0
    %v517 = vpop.f32.mrf.mxu0
    %v518 = vpop.f32.mrf.mxu0
    %519 = vdwg.mxu0
    %vm520 = vcmask 64512
    %521 = vst.msk [vmem:[#allocation7] sm:$0xff] %vm520, %v515
    // Predicated region
    $region46: #{tpu_custom_call.1} parent=1 // pred_check
      _
    $region47: #{tpu_custom_call.1} parent=1 // pred_check_branch
      %523 = sbr.rel (0) target = $region49
    $region48: #{tpu_custom_call.1} parent=1 // pred_region
      %s525 = ssub.s32 128, 128
      %526 = vsyncadd [#allocation4], %s525
      %s528 = sshll.u32 [#allocation7], 4
      %s529 = int_to_ptr.vmem [resolvable:$true] %s528
      %531 = dma.vmem_to_hbm [thread:$0]  %s529, 128, %s9, [#allocation4]
    $region49: #{tpu_custom_call.1} parent=1 // pred_fallthru
      _
    // Predicated region
    $region50: #{tpu_custom_call.1} parent=1 // pred_check
      _
    $region51: #{tpu_custom_call.1} parent=1 // pred_check_branch
      %533 = sbr.rel (0) target = $region53
    $region52: #{tpu_custom_call.1} parent=1 // pred_region
      %534 = dma.done [#allocation4], 128
    $region53: #{tpu_custom_call.1} parent=1 // pred_fallthru
      _
    %535 = vsyncpa [#allocation3], 1
    %536 = vsyncpa [#allocation6], 1
    %537 = vsyncpa [#allocation4], 1

</llo_original>
